<compile_context>
chip_gen: v5e
topology: v5e:2x2
jax: 0.10.0
libtpu: 0.0.40
codegen_flags: <defaults>
</compile_context>

<pallas_src>
import math
import numpy as np
import jax
import jax.numpy as jnp
from jax import lax
from jax.experimental import pallas as pl
from jax.experimental.pallas import tpu as pltpu

LOG2PI = math.log(2.0 * math.pi)


def _make_kernel(K, C, hidden, LBp, NB):
    C1 = C // 2
    C2 = C - C1

    def kernel(x_ref, bias_ref, logs_ref, w_ref, dlogc_ref, a_ref,
               w1_ref, b1_ref, w2_ref, b2_ref, m_ref,
               z_ref, logdet_ref, logp_ref):
        A = a_ref[...]                              # (LBp, LBp) block-diag adjacency
        cur0 = x_ref[0]                             # (C, LBp) channel-major activations
        ld_lane0 = jnp.zeros((1, LBp), jnp.float32)
        ld_const0 = jnp.zeros((1, 1), jnp.float32)

        def step(k, carry):
            cur, ld_lane, ld_const = carry
            # ---------------- ActNorm ----------------
            cur = (cur + bias_ref[k]) * jnp.exp(logs_ref[k])
            # ---------------- Invertible 1x1 conv (MXU) ----------------
            cur = jnp.dot(w_ref[k], cur, preferred_element_type=jnp.float32)
            # ---------------- Affine coupling with GCN net (all GEMMs) ----------------
            z1 = cur[:C1, :]                        # (C1, LBp)
            z2 = cur[C1:, :]                        # (C2, LBp)
            agg1 = jnp.dot(z1, A, preferred_element_type=jnp.float32)
            h1 = jnp.dot(w1_ref[k], agg1, preferred_element_type=jnp.float32) + b1_ref[k]
            h1 = jnp.maximum(h1, 0.0)
            agg2 = jnp.dot(h1, A, preferred_element_type=jnp.float32)
            h2 = jnp.dot(w2_ref[k], agg2, preferred_element_type=jnp.float32) + b2_ref[k]
            shift = h2[:C2, :]
            pre = h2[C2:, :] + 2.0
            # log(sigmoid(pre)) computed stably (avoids log(0) underflow); EUP exp/log.
            mneg = jnp.maximum(-pre, 0.0)
            log_scale = -(mneg + jnp.log(jnp.exp(-pre - mneg) + jnp.exp(-mneg)))
            scale = jnp.exp(log_scale)
            z2 = (z2 + shift) * scale
            cur = jnp.concatenate([z1, z2], axis=0)
            # logdet: per-lane coupling accumulator + per-step scalar constant (SMEM).
            ld_lane = ld_lane + jnp.sum(log_scale, axis=0, keepdims=True)
            ld_const = ld_const + dlogc_ref[k]
            return cur, ld_lane, ld_const

        cur, ld_lane, ld_const = lax.fori_loop(
            0, K, step, (cur0, ld_lane0, ld_const0), unroll=True)

        # Single full-width stores at the end of the tile.
        z_ref[...] = cur[None, :, :]

        # Per-sample reductions: sublane reduce then lane-segment selector matmul (MXU).
        M = m_ref[...]                              # (LBp, NB) 0/1 selector, zero on padded lanes
        logdet = jnp.dot(ld_lane, M, preferred_element_type=jnp.float32) + ld_const
        logdet_ref[...] = logdet[None, :, :]
        like = -0.5 * (LOG2PI + cur * cur)
        row = jnp.sum(like, axis=0, keepdims=True)  # (1, LBp)
        logp_ref[...] = jnp.dot(row, M, preferred_element_type=jnp.float32)[None, :, :]

    return kernel


def _choose_nb(N, V):
    """Largest divisor of N whose lane block NB*V stays <= 512 lanes."""
    best = 1
    for nb in range(1, N + 1):
        if N % nb == 0 and nb * V <= 512:
            best = nb
    return best


@jax.jit
def block_forward(x, params):
    N, C, V = x.shape
    K = params["bias"].shape[0]
    hidden = params["W1"].shape[1]
    C1 = C // 2
    C2 = C - C1

    NB = _choose_nb(N, V)
    T = N // NB
    LB = NB * V
    LBp = max(128, ((LB + 127) // 128) * 128)

    # Channel-major, lane-dense layout: (T, C, NB*V) padded to LBp lanes.
    x_cm = x.reshape(T, NB, C, V).transpose(0, 2, 1, 3).reshape(T, C, LB)
    x_cm = jnp.pad(x_cm, ((0, 0), (0, 0), (0, LBp - LB)))

    # Block-diagonal per-tile adjacency (zero rows/cols on padded lanes keep
    # padding from leaking into real lanes) and per-sample lane-segment selector.
    A = params["A"].astype(jnp.float32)
    A_blk = jnp.kron(jnp.eye(NB, dtype=jnp.float32), A)
    A_blk = jnp.pad(A_blk, ((0, LBp - LB), (0, LBp - LB)))
    M = jnp.kron(jnp.eye(NB, dtype=jnp.float32), jnp.ones((V, 1), jnp.float32))
    M = jnp.pad(M, ((0, LBp - LB), (0, 0)))

    kernel = _make_kernel(K, C, hidden, LBp, NB)

    z_cm, logdet, logp = pl.pallas_call(
        kernel,
        out_shape=(
            jax.ShapeDtypeStruct((T, C, LBp), jnp.float32),
            jax.ShapeDtypeStruct((T, 1, NB), jnp.float32),
            jax.ShapeDtypeStruct((T, 1, NB), jnp.float32),
        ),
        grid_spec=pltpu.PrefetchScalarGridSpec(
            num_scalar_prefetch=0,
            grid=(T,),
            in_specs=[
                pl.BlockSpec((1, C, LBp), lambda t: (t, 0, 0)),            # x (aliased to z)
                pl.BlockSpec((K, C, 1), lambda t: (0, 0, 0)),              # actnorm bias stack
                pl.BlockSpec((K, C, 1), lambda t: (0, 0, 0)),              # actnorm logs stack
                pl.BlockSpec((K, C, C), lambda t: (0, 0, 0)),              # invconv W stack
                pl.BlockSpec(memory_space=pltpu.MemorySpace.SMEM),         # dlogc (K,) scalars
                pl.BlockSpec((LBp, LBp), lambda t: (0, 0)),                # block-diag adjacency
                pl.BlockSpec((K, hidden, C1), lambda t: (0, 0, 0)),        # gcn W1 stack
                pl.BlockSpec((K, hidden, 1), lambda t: (0, 0, 0)),         # gcn b1 stack
                pl.BlockSpec((K, 2 * C2, hidden), lambda t: (0, 0, 0)),    # gcn W2 stack
                pl.BlockSpec((K, 2 * C2, 1), lambda t: (0, 0, 0)),         # gcn b2 stack
                pl.BlockSpec((LBp, NB), lambda t: (0, 0)),                 # per-sample selector
            ],
            out_specs=[
                pl.BlockSpec((1, C, LBp), lambda t: (t, 0, 0)),            # z
                pl.BlockSpec((1, 1, NB), lambda t: (t, 0, 0)),             # logdet
                pl.BlockSpec((1, 1, NB), lambda t: (t, 0, 0)),             # logp
            ],
        ),
        input_output_aliases={0: 0},
        compiler_params=pltpu.CompilerParams(dimension_semantics=("parallel",)),
    )(x_cm, params["bias"], params["logs"], params["W"], params["dlogc"],
      A_blk, params["W1"], params["b1"], params["W2"], params["b2"], M)

    z = z_cm[:, :, :LB].reshape(T, C, NB, V).transpose(0, 2, 1, 3).reshape(N, C, V)
    return logdet.reshape(N), logp.reshape(N), z


def build_params(key, K, C, V, hidden):
    C1 = C // 2
    C2 = C - C1
    ks = jax.random.split(key, 10)

    bias = (0.1 * jax.random.normal(ks[0], (K, C, 1))).astype(jnp.float32)
    logs = (0.1 * jax.random.normal(ks[1], (K, C, 1))).astype(jnp.float32)

    # Invertible 1x1 conv, LU-decomposed: W = P @ L @ (U + diag(s))
    l_rand = 0.1 * jax.random.normal(ks[2], (K, C, C))
    u_rand = 0.1 * jax.random.normal(ks[3], (K, C, C))
    sign = jnp.where(jax.random.bernoulli(ks[4], 0.5, (K, C)), 1.0, -1.0)
    mag = 0.5 + jax.random.uniform(ks[5], (K, C))
    s = sign * mag
    L = l_rand * jnp.tril(jnp.ones((C, C)), -1)[None] + jnp.eye(C)[None]
    U = u_rand * jnp.triu(jnp.ones((C, C)), 1)[None]
    P = jnp.stack([jnp.eye(C)[jnp.roll(jnp.arange(C), k)] for k in range(K)])
    W = jnp.einsum("kij,kjl->kil", P,
                   jnp.einsum("kij,kjl->kil", L, U + jax.vmap(jnp.diag)(s)))
    slog = jnp.sum(jnp.log(jnp.abs(s)), axis=1)                    # (K,)

    # Constant per-flow logdet term: V * (sum(logs_k) + sum(log|s_k|)).  (K,) for SMEM.
    dlogc = (float(V) * (jnp.sum(logs, axis=(1, 2)) + slog)).astype(jnp.float32)

    # Normalized chain-graph adjacency (+ self loops) as the 'locomotion' graph stand-in.
    A = np.zeros((V, V), np.float32)
    for i in range(V - 1):
        A[i, i + 1] = 1.0
        A[i + 1, i] = 1.0
    A += np.eye(V, dtype=np.float32)
    A = A / A.sum(axis=0, keepdims=True)

    W1 = (0.3 * jax.random.normal(ks[6], (K, hidden, C1))).astype(jnp.float32)
    b1 = (0.1 * jax.random.normal(ks[7], (K, hidden, 1))).astype(jnp.float32)
    W2 = (0.1 * jax.random.normal(ks[8], (K, 2 * C2, hidden))).astype(jnp.float32)
    b2 = (0.1 * jax.random.normal(ks[9], (K, 2 * C2, 1))).astype(jnp.float32)

    return dict(bias=bias, logs=logs, W=W.astype(jnp.float32),
                slog=slog.astype(jnp.float32), dlogc=dlogc,
                A=jnp.asarray(A), W1=W1, b1=b1, W2=W2, b2=b2)


def block_reference(x, params, K):
    """Pure-JAX reference mirroring the PyTorch Block.forward semantics."""
    N, C, V = x.shape
    C1 = C // 2
    C2 = C - C1
    hp = jax.lax.Precision.HIGHEST
    cur = x
    logdet = jnp.zeros((N,), jnp.float32)
    for k in range(K):
        cur = (cur + params["bias"][k][None]) * jnp.exp(params["logs"][k][None])
        logdet = logdet + float(V) * jnp.sum(params["logs"][k])
        cur = jnp.einsum("ij,njv->niv", params["W"][k], cur, precision=hp)
        logdet = logdet + float(V) * params["slog"][k]
        z1, z2 = cur[:, :C1, :], cur[:, C1:, :]
        agg1 = jnp.einsum("ncv,vu->ncu", z1, params["A"], precision=hp)
        h1 = jax.nn.relu(jnp.einsum("hc,ncv->nhv", params["W1"][k], agg1, precision=hp)
                         + params["b1"][k][None])
        agg2 = jnp.einsum("nhv,vu->nhu", h1, params["A"], precision=hp)
        h2 = jnp.einsum("oh,nhv->nov", params["W2"][k], agg2, precision=hp) \
            + params["b2"][k][None]
        shift = h2[:, :C2, :]
        scale = jax.nn.sigmoid(h2[:, C2:, :] + 2.0)
        z2 = (z2 + shift) * scale
        logdet = logdet + jnp.sum(jnp.log(scale), axis=(1, 2))
        cur = jnp.concatenate([z1, z2], axis=1)
    logp = jnp.sum(-0.5 * (jnp.log(2.0 * jnp.pi) + cur ** 2), axis=(1, 2))
    return logdet, logp, cur


if __name__ == "__main__":
    N, C, V, HIDDEN, K = 2, 3, 16, 32, 2   # in_channels=3 (coupling hardcodes 3), K flow steps

    root = jax.random.PRNGKey(0)
    kx, kp = jax.random.split(root)
    params = build_params(kp, K, C, V, HIDDEN)
    x = jax.random.normal(kx, (N, C, V), jnp.float32)

    logdet, logp, z = block_forward(x, params)
    jax.block_until_ready((logdet, logp, z))

    ld_ref, lp_ref, z_r = block_reference(x, params, K)
    np.testing.assert_allclose(np.asarray(z), np.asarray(z_r), rtol=1e-3, atol=1e-4)
    np.testing.assert_allclose(np.asarray(logdet), np.asarray(ld_ref), rtol=1e-3, atol=1e-3)
    np.testing.assert_allclose(np.asarray(logp), np.asarray(lp_ref), rtol=1e-3, atol=1e-3)

    print("KERNEL_OK")
</pallas_src>

<mosaic_0001>
module attributes {stable_mosaic.version = 11 : i64} {
  func.func @kernel(%arg0: i32, %arg1: memref<1x3x128xf32, #tpu.memory_space<vmem>>, %arg2: memref<2x3x1xf32, #tpu.memory_space<vmem>>, %arg3: memref<2x3x1xf32, #tpu.memory_space<vmem>>, %arg4: memref<2x3x3xf32, #tpu.memory_space<vmem>>, %arg5: memref<2xf32, #tpu.memory_space<smem>>, %arg6: memref<128x128xf32, #tpu.memory_space<vmem>>, %arg7: memref<2x32x1xf32, #tpu.memory_space<vmem>>, %arg8: memref<2x32x1xf32, #tpu.memory_space<vmem>>, %arg9: memref<2x4x32xf32, #tpu.memory_space<vmem>>, %arg10: memref<2x4x1xf32, #tpu.memory_space<vmem>>, %arg11: memref<128x2xf32, #tpu.memory_space<vmem>>, %arg12: memref<1x3x128xf32, #tpu.memory_space<vmem>>, %arg13: memref<1x1x2xf32, #tpu.memory_space<vmem>>, %arg14: memref<1x1x2xf32, #tpu.memory_space<vmem>>) attributes {dimension_semantics = [#tpu.dimension_semantics<parallel>], iteration_bounds = array<i64: 1>, scalar_prefetch = 0 : i64, scratch_operands = 0 : i64, tpu.core_type = #tpu.core_type<tc>, window_params = [{transform_indices = @transform_0, window_bounds = array<i64: 1, 3, 128>}, {pipeline_mode = #tpu.pipeline_mode<synchronous>, transform_indices = @transform_1, window_bounds = array<i64: 2, 3, 1>}, {pipeline_mode = #tpu.pipeline_mode<synchronous>, transform_indices = @transform_2, window_bounds = array<i64: 2, 3, 1>}, {pipeline_mode = #tpu.pipeline_mode<synchronous>, transform_indices = @transform_3, window_bounds = array<i64: 2, 3, 3>}, {transform_indices = @transform_4, window_bounds = array<i64: 2>}, {pipeline_mode = #tpu.pipeline_mode<synchronous>, transform_indices = @transform_5, window_bounds = array<i64: 128, 128>}, {pipeline_mode = #tpu.pipeline_mode<synchronous>, transform_indices = @transform_6, window_bounds = array<i64: 2, 32, 1>}, {pipeline_mode = #tpu.pipeline_mode<synchronous>, transform_indices = @transform_7, window_bounds = array<i64: 2, 32, 1>}, {pipeline_mode = #tpu.pipeline_mode<synchronous>, transform_indices = @transform_8, window_bounds = array<i64: 2, 4, 32>}, {pipeline_mode = #tpu.pipeline_mode<synchronous>, transform_indices = @transform_9, window_bounds = array<i64: 2, 4, 1>}, {pipeline_mode = #tpu.pipeline_mode<synchronous>, transform_indices = @transform_10, window_bounds = array<i64: 128, 2>}, {transform_indices = @transform_11, window_bounds = array<i64: 1, 3, 128>}, {transform_indices = @transform_12, window_bounds = array<i64: 1, 1, 2>}, {transform_indices = @transform_13, window_bounds = array<i64: 1, 1, 2>}]} {
    %c0 = arith.constant 0 : index
    %c0_0 = arith.constant 0 : index
    %0 = vector.load %arg6[%c0, %c0_0] : memref<128x128xf32, #tpu.memory_space<vmem>>, vector<128x128xf32>
    %c0_1 = arith.constant 0 : index
    %c0_2 = arith.constant 0 : index
    %c0_3 = arith.constant 0 : index
    %1 = vector.load %arg1[%c0_1, %c0_2, %c0_3] : memref<1x3x128xf32, #tpu.memory_space<vmem>>, vector<1x3x128xf32>
    %2 = vector.shape_cast %1 : vector<1x3x128xf32> to vector<3x128xf32>
    %cst = arith.constant 0.000000e+00 : f32
    %3 = vector.broadcast %cst : f32 to vector<1x128xf32>
    %cst_4 = arith.constant 0.000000e+00 : f32
    %4 = vector.broadcast %cst_4 : f32 to vector<1x1xf32>
    %c0_i32 = arith.constant 0 : i32
    %5 = arith.index_cast %c0_i32 : i32 to index
    %c0_5 = arith.constant 0 : index
    %c0_6 = arith.constant 0 : index
    %6 = vector.load %arg2[%5, %c0_5, %c0_6] : memref<2x3x1xf32, #tpu.memory_space<vmem>>, vector<1x3x1xf32>
    %7 = vector.shape_cast %6 : vector<1x3x1xf32> to vector<3x1xf32>
    %8 = vector.broadcast %7 : vector<3x1xf32> to vector<3x128xf32>
    %9 = arith.addf %2, %8 : vector<3x128xf32>
    %10 = arith.index_cast %c0_i32 : i32 to index
    %c0_7 = arith.constant 0 : index
    %c0_8 = arith.constant 0 : index
    %11 = vector.load %arg3[%10, %c0_7, %c0_8] : memref<2x3x1xf32, #tpu.memory_space<vmem>>, vector<1x3x1xf32>
    %12 = vector.shape_cast %11 : vector<1x3x1xf32> to vector<3x1xf32>
    %13 = math.exp %12 : vector<3x1xf32>
    %14 = vector.broadcast %13 : vector<3x1xf32> to vector<3x128xf32>
    %15 = arith.mulf %9, %14 : vector<3x128xf32>
    %16 = arith.index_cast %c0_i32 : i32 to index
    %c0_9 = arith.constant 0 : index
    %c0_10 = arith.constant 0 : index
    %17 = vector.load %arg4[%16, %c0_9, %c0_10] : memref<2x3x3xf32, #tpu.memory_space<vmem>>, vector<1x3x3xf32>
    %18 = vector.shape_cast %17 : vector<1x3x3xf32> to vector<3x3xf32>
    %cst_11 = arith.constant dense<0.000000e+00> : vector<3x128xf32>
    %19 = tpu.matmul %18, %15, %cst_11 {dimension_numbers = #tpu.dot_dimension_numbers<[1], [0], [0], [1], [0, 0, 1, 1], [], []>} : vector<3x3xf32>, vector<3x128xf32>, vector<3x128xf32> -> vector<3x128xf32>
    %20 = vector.extract_strided_slice %19 {offsets = [0, 0], sizes = [1, 128], strides = [1, 1]} : vector<3x128xf32> to vector<1x128xf32>
    %21 = vector.extract_strided_slice %19 {offsets = [1, 0], sizes = [2, 128], strides = [1, 1]} : vector<3x128xf32> to vector<2x128xf32>
    %cst_12 = arith.constant dense<0.000000e+00> : vector<1x128xf32>
    %22 = tpu.matmul %20, %0, %cst_12 {dimension_numbers = #tpu.dot_dimension_numbers<[1], [0], [0], [1], [0, 0, 1, 1], [], []>} : vector<1x128xf32>, vector<128x128xf32>, vector<1x128xf32> -> vector<1x128xf32>
    %23 = arith.index_cast %c0_i32 : i32 to index
    %c0_13 = arith.constant 0 : index
    %c0_14 = arith.constant 0 : index
    %24 = vector.load %arg7[%23, %c0_13, %c0_14] : memref<2x32x1xf32, #tpu.memory_space<vmem>>, vector<1x32x1xf32>
    %25 = vector.shape_cast %24 : vector<1x32x1xf32> to vector<32x1xf32>
    %cst_15 = arith.constant dense<0.000000e+00> : vector<32x128xf32>
    %26 = tpu.matmul %25, %22, %cst_15 {dimension_numbers = #tpu.dot_dimension_numbers<[1], [0], [0], [1], [0, 0, 1, 1], [], []>} : vector<32x1xf32>, vector<1x128xf32>, vector<32x128xf32> -> vector<32x128xf32>
    %27 = arith.index_cast %c0_i32 : i32 to index
    %c0_16 = arith.constant 0 : index
    %c0_17 = arith.constant 0 : index
    %28 = vector.load %arg8[%27, %c0_16, %c0_17] : memref<2x32x1xf32, #tpu.memory_space<vmem>>, vector<1x32x1xf32>
    %29 = vector.shape_cast %28 : vector<1x32x1xf32> to vector<32x1xf32>
    %30 = vector.broadcast %29 : vector<32x1xf32> to vector<32x128xf32>
    %31 = arith.addf %26, %30 : vector<32x128xf32>
    %cst_18 = arith.constant 0.000000e+00 : f32
    %32 = vector.broadcast %cst_18 : f32 to vector<32x128xf32>
    %33 = arith.maximumf %31, %32 : vector<32x128xf32>
    %cst_19 = arith.constant dense<0.000000e+00> : vector<32x128xf32>
    %34 = tpu.matmul %33, %0, %cst_19 {dimension_numbers = #tpu.dot_dimension_numbers<[1], [0], [0], [1], [0, 0, 1, 1], [], []>} : vector<32x128xf32>, vector<128x128xf32>, vector<32x128xf32> -> vector<32x128xf32>
    %35 = arith.index_cast %c0_i32 : i32 to index
    %c0_20 = arith.constant 0 : index
    %c0_21 = arith.constant 0 : index
    %36 = vector.load %arg9[%35, %c0_20, %c0_21] : memref<2x4x32xf32, #tpu.memory_space<vmem>>, vector<1x4x32xf32>
    %37 = vector.shape_cast %36 : vector<1x4x32xf32> to vector<4x32xf32>
    %cst_22 = arith.constant dense<0.000000e+00> : vector<4x128xf32>
    %38 = tpu.matmul %37, %34, %cst_22 {dimension_numbers = #tpu.dot_dimension_numbers<[1], [0], [0], [1], [0, 0, 1, 1], [], []>} : vector<4x32xf32>, vector<32x128xf32>, vector<4x128xf32> -> vector<4x128xf32>
    %39 = arith.index_cast %c0_i32 : i32 to index
    %c0_23 = arith.constant 0 : index
    %c0_24 = arith.constant 0 : index
    %40 = vector.load %arg10[%39, %c0_23, %c0_24] : memref<2x4x1xf32, #tpu.memory_space<vmem>>, vector<1x4x1xf32>
    %41 = vector.shape_cast %40 : vector<1x4x1xf32> to vector<4x1xf32>
    %42 = vector.broadcast %41 : vector<4x1xf32> to vector<4x128xf32>
    %43 = arith.addf %38, %42 : vector<4x128xf32>
    %44 = vector.extract_strided_slice %43 {offsets = [0, 0], sizes = [2, 128], strides = [1, 1]} : vector<4x128xf32> to vector<2x128xf32>
    %45 = vector.extract_strided_slice %43 {offsets = [2, 0], sizes = [2, 128], strides = [1, 1]} : vector<4x128xf32> to vector<2x128xf32>
    %cst_25 = arith.constant 2.000000e+00 : f32
    %46 = vector.broadcast %cst_25 : f32 to vector<2x128xf32>
    %47 = arith.addf %45, %46 : vector<2x128xf32>
    %cst_26 = arith.constant 0.000000e+00 : f32
    %48 = vector.broadcast %cst_26 : f32 to vector<2x128xf32>
    %49 = arith.subf %48, %47 : vector<2x128xf32>
    %cst_27 = arith.constant 0.000000e+00 : f32
    %50 = vector.broadcast %cst_27 : f32 to vector<2x128xf32>
    %51 = arith.maximumf %49, %50 : vector<2x128xf32>
    %cst_28 = arith.constant 0.000000e+00 : f32
    %52 = vector.broadcast %cst_28 : f32 to vector<2x128xf32>
    %53 = arith.subf %52, %47 : vector<2x128xf32>
    %54 = arith.subf %53, %51 : vector<2x128xf32>
    %55 = math.exp %54 : vector<2x128xf32>
    %cst_29 = arith.constant 0.000000e+00 : f32
    %56 = vector.broadcast %cst_29 : f32 to vector<2x128xf32>
    %57 = arith.subf %56, %51 : vector<2x128xf32>
    %58 = math.exp %57 : vector<2x128xf32>
    %59 = arith.addf %55, %58 : vector<2x128xf32>
    %60 = math.log %59 : vector<2x128xf32>
    %61 = arith.addf %51, %60 : vector<2x128xf32>
    %cst_30 = arith.constant 0.000000e+00 : f32
    %62 = vector.broadcast %cst_30 : f32 to vector<2x128xf32>
    %63 = arith.subf %62, %61 : vector<2x128xf32>
    %64 = math.exp %63 : vector<2x128xf32>
    %65 = arith.addf %21, %44 : vector<2x128xf32>
    %66 = arith.mulf %65, %64 : vector<2x128xf32>
    %67 = tpu.concatenate %20, %66 in 0 : vector<1x128xf32>, vector<2x128xf32> -> vector<3x128xf32>
    %cst_31 = arith.constant dense<0.000000e+00> : vector<128xf32>
    %68 = vector.multi_reduction <add>, %63, %cst_31 [0] : vector<2x128xf32> to vector<128xf32>
    %69 = vector.shape_cast %68 : vector<128xf32> to vector<1x128xf32>
    %70 = arith.addf %3, %69 : vector<1x128xf32>
    %71 = arith.index_cast %c0_i32 : i32 to index
    %72 = memref.load %arg5[%71] : memref<2xf32, #tpu.memory_space<smem>>
    %73 = vector.broadcast %72 : f32 to vector<1x1xf32>
    %74 = arith.addf %4, %73 : vector<1x1xf32>
    %c1_i32 = arith.constant 1 : i32
    %75 = arith.index_cast %c1_i32 : i32 to index
    %c0_32 = arith.constant 0 : index
    %c0_33 = arith.constant 0 : index
    %76 = vector.load %arg2[%75, %c0_32, %c0_33] : memref<2x3x1xf32, #tpu.memory_space<vmem>>, vector<1x3x1xf32>
    %77 = vector.shape_cast %76 : vector<1x3x1xf32> to vector<3x1xf32>
    %78 = vector.broadcast %77 : vector<3x1xf32> to vector<3x128xf32>
    %79 = arith.addf %67, %78 : vector<3x128xf32>
    %80 = arith.index_cast %c1_i32 : i32 to index
    %c0_34 = arith.constant 0 : index
    %c0_35 = arith.constant 0 : index
    %81 = vector.load %arg3[%80, %c0_34, %c0_35] : memref<2x3x1xf32, #tpu.memory_space<vmem>>, vector<1x3x1xf32>
    %82 = vector.shape_cast %81 : vector<1x3x1xf32> to vector<3x1xf32>
    %83 = math.exp %82 : vector<3x1xf32>
    %84 = vector.broadcast %83 : vector<3x1xf32> to vector<3x128xf32>
    %85 = arith.mulf %79, %84 : vector<3x128xf32>
    %86 = arith.index_cast %c1_i32 : i32 to index
    %c0_36 = arith.constant 0 : index
    %c0_37 = arith.constant 0 : index
    %87 = vector.load %arg4[%86, %c0_36, %c0_37] : memref<2x3x3xf32, #tpu.memory_space<vmem>>, vector<1x3x3xf32>
    %88 = vector.shape_cast %87 : vector<1x3x3xf32> to vector<3x3xf32>
    %cst_38 = arith.constant dense<0.000000e+00> : vector<3x128xf32>
    %89 = tpu.matmul %88, %85, %cst_38 {dimension_numbers = #tpu.dot_dimension_numbers<[1], [0], [0], [1], [0, 0, 1, 1], [], []>} : vector<3x3xf32>, vector<3x128xf32>, vector<3x128xf32> -> vector<3x128xf32>
    %90 = vector.extract_strided_slice %89 {offsets = [0, 0], sizes = [1, 128], strides = [1, 1]} : vector<3x128xf32> to vector<1x128xf32>
    %91 = vector.extract_strided_slice %89 {offsets = [1, 0], sizes = [2, 128], strides = [1, 1]} : vector<3x128xf32> to vector<2x128xf32>
    %cst_39 = arith.constant dense<0.000000e+00> : vector<1x128xf32>
    %92 = tpu.matmul %90, %0, %cst_39 {dimension_numbers = #tpu.dot_dimension_numbers<[1], [0], [0], [1], [0, 0, 1, 1], [], []>} : vector<1x128xf32>, vector<128x128xf32>, vector<1x128xf32> -> vector<1x128xf32>
    %93 = arith.index_cast %c1_i32 : i32 to index
    %c0_40 = arith.constant 0 : index
    %c0_41 = arith.constant 0 : index
    %94 = vector.load %arg7[%93, %c0_40, %c0_41] : memref<2x32x1xf32, #tpu.memory_space<vmem>>, vector<1x32x1xf32>
    %95 = vector.shape_cast %94 : vector<1x32x1xf32> to vector<32x1xf32>
    %cst_42 = arith.constant dense<0.000000e+00> : vector<32x128xf32>
    %96 = tpu.matmul %95, %92, %cst_42 {dimension_numbers = #tpu.dot_dimension_numbers<[1], [0], [0], [1], [0, 0, 1, 1], [], []>} : vector<32x1xf32>, vector<1x128xf32>, vector<32x128xf32> -> vector<32x128xf32>
    %97 = arith.index_cast %c1_i32 : i32 to index
    %c0_43 = arith.constant 0 : index
    %c0_44 = arith.constant 0 : index
    %98 = vector.load %arg8[%97, %c0_43, %c0_44] : memref<2x32x1xf32, #tpu.memory_space<vmem>>, vector<1x32x1xf32>
    %99 = vector.shape_cast %98 : vector<1x32x1xf32> to vector<32x1xf32>
    %100 = vector.broadcast %99 : vector<32x1xf32> to vector<32x128xf32>
    %101 = arith.addf %96, %100 : vector<32x128xf32>
    %cst_45 = arith.constant 0.000000e+00 : f32
    %102 = vector.broadcast %cst_45 : f32 to vector<32x128xf32>
    %103 = arith.maximumf %101, %102 : vector<32x128xf32>
    %cst_46 = arith.constant dense<0.000000e+00> : vector<32x128xf32>
    %104 = tpu.matmul %103, %0, %cst_46 {dimension_numbers = #tpu.dot_dimension_numbers<[1], [0], [0], [1], [0, 0, 1, 1], [], []>} : vector<32x128xf32>, vector<128x128xf32>, vector<32x128xf32> -> vector<32x128xf32>
    %105 = arith.index_cast %c1_i32 : i32 to index
    %c0_47 = arith.constant 0 : index
    %c0_48 = arith.constant 0 : index
    %106 = vector.load %arg9[%105, %c0_47, %c0_48] : memref<2x4x32xf32, #tpu.memory_space<vmem>>, vector<1x4x32xf32>
    %107 = vector.shape_cast %106 : vector<1x4x32xf32> to vector<4x32xf32>
    %cst_49 = arith.constant dense<0.000000e+00> : vector<4x128xf32>
    %108 = tpu.matmul %107, %104, %cst_49 {dimension_numbers = #tpu.dot_dimension_numbers<[1], [0], [0], [1], [0, 0, 1, 1], [], []>} : vector<4x32xf32>, vector<32x128xf32>, vector<4x128xf32> -> vector<4x128xf32>
    %109 = arith.index_cast %c1_i32 : i32 to index
    %c0_50 = arith.constant 0 : index
    %c0_51 = arith.constant 0 : index
    %110 = vector.load %arg10[%109, %c0_50, %c0_51] : memref<2x4x1xf32, #tpu.memory_space<vmem>>, vector<1x4x1xf32>
    %111 = vector.shape_cast %110 : vector<1x4x1xf32> to vector<4x1xf32>
    %112 = vector.broadcast %111 : vector<4x1xf32> to vector<4x128xf32>
    %113 = arith.addf %108, %112 : vector<4x128xf32>
    %114 = vector.extract_strided_slice %113 {offsets = [0, 0], sizes = [2, 128], strides = [1, 1]} : vector<4x128xf32> to vector<2x128xf32>
    %115 = vector.extract_strided_slice %113 {offsets = [2, 0], sizes = [2, 128], strides = [1, 1]} : vector<4x128xf32> to vector<2x128xf32>
    %cst_52 = arith.constant 2.000000e+00 : f32
    %116 = vector.broadcast %cst_52 : f32 to vector<2x128xf32>
    %117 = arith.addf %115, %116 : vector<2x128xf32>
    %cst_53 = arith.constant 0.000000e+00 : f32
    %118 = vector.broadcast %cst_53 : f32 to vector<2x128xf32>
    %119 = arith.subf %118, %117 : vector<2x128xf32>
    %cst_54 = arith.constant 0.000000e+00 : f32
    %120 = vector.broadcast %cst_54 : f32 to vector<2x128xf32>
    %121 = arith.maximumf %119, %120 : vector<2x128xf32>
    %cst_55 = arith.constant 0.000000e+00 : f32
    %122 = vector.broadcast %cst_55 : f32 to vector<2x128xf32>
    %123 = arith.subf %122, %117 : vector<2x128xf32>
    %124 = arith.subf %123, %121 : vector<2x128xf32>
    %125 = math.exp %124 : vector<2x128xf32>
    %cst_56 = arith.constant 0.000000e+00 : f32
    %126 = vector.broadcast %cst_56 : f32 to vector<2x128xf32>
    %127 = arith.subf %126, %121 : vector<2x128xf32>
    %128 = math.exp %127 : vector<2x128xf32>
    %129 = arith.addf %125, %128 : vector<2x128xf32>
    %130 = math.log %129 : vector<2x128xf32>
    %131 = arith.addf %121, %130 : vector<2x128xf32>
    %cst_57 = arith.constant 0.000000e+00 : f32
    %132 = vector.broadcast %cst_57 : f32 to vector<2x128xf32>
    %133 = arith.subf %132, %131 : vector<2x128xf32>
    %134 = math.exp %133 : vector<2x128xf32>
    %135 = arith.addf %91, %114 : vector<2x128xf32>
    %136 = arith.mulf %135, %134 : vector<2x128xf32>
    %137 = tpu.concatenate %90, %136 in 0 : vector<1x128xf32>, vector<2x128xf32> -> vector<3x128xf32>
    %cst_58 = arith.constant dense<0.000000e+00> : vector<128xf32>
    %138 = vector.multi_reduction <add>, %133, %cst_58 [0] : vector<2x128xf32> to vector<128xf32>
    %139 = vector.shape_cast %138 : vector<128xf32> to vector<1x128xf32>
    %140 = arith.addf %70, %139 : vector<1x128xf32>
    %141 = arith.index_cast %c1_i32 : i32 to index
    %142 = memref.load %arg5[%141] : memref<2xf32, #tpu.memory_space<smem>>
    %143 = vector.broadcast %142 : f32 to vector<1x1xf32>
    %144 = arith.addf %74, %143 : vector<1x1xf32>
    %c2_i32 = arith.constant 2 : i32
    %145 = vector.shape_cast %137 : vector<3x128xf32> to vector<1x3x128xf32>
    %c0_59 = arith.constant 0 : index
    %c0_60 = arith.constant 0 : index
    %c0_61 = arith.constant 0 : index
    %146 = vector.load %arg12[%c0_59, %c0_60, %c0_61] : memref<1x3x128xf32, #tpu.memory_space<vmem>>, vector<1x3x128xf32>
    tpu.vector_store %arg12[%c0_59, %c0_60, %c0_61], %145 {strides = array<i32>} : memref<1x3x128xf32, #tpu.memory_space<vmem>>, vector<1x3x128xf32>,
    %c0_62 = arith.constant 0 : index
    %c0_63 = arith.constant 0 : index
    %147 = vector.load %arg11[%c0_62, %c0_63] : memref<128x2xf32, #tpu.memory_space<vmem>>, vector<128x2xf32>
    %cst_64 = arith.constant dense<0.000000e+00> : vector<1x2xf32>
    %148 = tpu.matmul %140, %147, %cst_64 {dimension_numbers = #tpu.dot_dimension_numbers<[1], [0], [0], [1], [0, 0, 1, 1], [], []>} : vector<1x128xf32>, vector<128x2xf32>, vector<1x2xf32> -> vector<1x2xf32>
    %149 = vector.broadcast %144 : vector<1x1xf32> to vector<1x2xf32>
    %150 = arith.addf %148, %149 : vector<1x2xf32>
    %151 = vector.shape_cast %150 : vector<1x2xf32> to vector<1x1x2xf32>
    %c0_65 = arith.constant 0 : index
    %c0_66 = arith.constant 0 : index
    %c0_67 = arith.constant 0 : index
    %152 = vector.load %arg13[%c0_65, %c0_66, %c0_67] : memref<1x1x2xf32, #tpu.memory_space<vmem>>, vector<1x1x2xf32>
    tpu.vector_store %arg13[%c0_65, %c0_66, %c0_67], %151 {strides = array<i32>} : memref<1x1x2xf32, #tpu.memory_space<vmem>>, vector<1x1x2xf32>,
    %153 = arith.mulf %137, %137 : vector<3x128xf32>
    %cst_68 = arith.constant 1.83787704 : f32
    %154 = vector.broadcast %cst_68 : f32 to vector<3x128xf32>
    %155 = arith.addf %154, %153 : vector<3x128xf32>
    %cst_69 = arith.constant -5.000000e-01 : f32
    %156 = vector.broadcast %cst_69 : f32 to vector<3x128xf32>
    %157 = arith.mulf %156, %155 : vector<3x128xf32>
    %cst_70 = arith.constant dense<0.000000e+00> : vector<128xf32>
    %158 = vector.multi_reduction <add>, %157, %cst_70 [0] : vector<3x128xf32> to vector<128xf32>
    %159 = vector.shape_cast %158 : vector<128xf32> to vector<1x128xf32>
    %cst_71 = arith.constant dense<0.000000e+00> : vector<1x2xf32>
    %160 = tpu.matmul %159, %147, %cst_71 {dimension_numbers = #tpu.dot_dimension_numbers<[1], [0], [0], [1], [0, 0, 1, 1], [], []>} : vector<1x128xf32>, vector<128x2xf32>, vector<1x2xf32> -> vector<1x2xf32>
    %161 = vector.shape_cast %160 : vector<1x2xf32> to vector<1x1x2xf32>
    %c0_72 = arith.constant 0 : index
    %c0_73 = arith.constant 0 : index
    %c0_74 = arith.constant 0 : index
    %162 = vector.load %arg14[%c0_72, %c0_73, %c0_74] : memref<1x1x2xf32, #tpu.memory_space<vmem>>, vector<1x1x2xf32>
    tpu.vector_store %arg14[%c0_72, %c0_73, %c0_74], %161 {strides = array<i32>} : memref<1x1x2xf32, #tpu.memory_space<vmem>>, vector<1x1x2xf32>,
    return
  }
  func.func @transform_0(%arg0: i32) -> (i32, i32, i32) {
    %c0_i32 = arith.constant 0 : i32
    %c0_i32_0 = arith.constant 0 : i32
    %c0_i32_1 = arith.constant 0 : i32
    return %arg0, %c0_i32, %c0_i32_0 : i32, i32, i32
  }
  func.func @transform_1(%arg0: i32) -> (i32, i32, i32) {
    %c0_i32 = arith.constant 0 : i32
    %c0_i32_0 = arith.constant 0 : i32
    %c0_i32_1 = arith.constant 0 : i32
    %c0_i32_2 = arith.constant 0 : i32
    return %c0_i32, %c0_i32_0, %c0_i32_1 : i32, i32, i32
  }
  func.func @transform_2(%arg0: i32) -> (i32, i32, i32) {
    %c0_i32 = arith.constant 0 : i32
    %c0_i32_0 = arith.constant 0 : i32
    %c0_i32_1 = arith.constant 0 : i32
    %c0_i32_2 = arith.constant 0 : i32
    return %c0_i32, %c0_i32_0, %c0_i32_1 : i32, i32, i32
  }
  func.func @transform_3(%arg0: i32) -> (i32, i32, i32) {
    %c0_i32 = arith.constant 0 : i32
    %c0_i32_0 = arith.constant 0 : i32
    %c0_i32_1 = arith.constant 0 : i32
    %c0_i32_2 = arith.constant 0 : i32
    return %c0_i32, %c0_i32_0, %c0_i32_1 : i32, i32, i32
  }
  func.func @transform_4(%arg0: i32) -> i32 {
    %c0_i32 = arith.constant 0 : i32
    %c0_i32_0 = arith.constant 0 : i32
    return %c0_i32 : i32
  }
  func.func @transform_5(%arg0: i32) -> (i32, i32) {
    %c0_i32 = arith.constant 0 : i32
    %c0_i32_0 = arith.constant 0 : i32
    %c0_i32_1 = arith.constant 0 : i32
    return %c0_i32, %c0_i32_0 : i32, i32
  }
  func.func @transform_6(%arg0: i32) -> (i32, i32, i32) {
    %c0_i32 = arith.constant 0 : i32
    %c0_i32_0 = arith.constant 0 : i32
    %c0_i32_1 = arith.constant 0 : i32
    %c0_i32_2 = arith.constant 0 : i32
    return %c0_i32, %c0_i32_0, %c0_i32_1 : i32, i32, i32
  }
  func.func @transform_7(%arg0: i32) -> (i32, i32, i32) {
    %c0_i32 = arith.constant 0 : i32
    %c0_i32_0 = arith.constant 0 : i32
    %c0_i32_1 = arith.constant 0 : i32
    %c0_i32_2 = arith.constant 0 : i32
    return %c0_i32, %c0_i32_0, %c0_i32_1 : i32, i32, i32
  }
  func.func @transform_8(%arg0: i32) -> (i32, i32, i32) {
    %c0_i32 = arith.constant 0 : i32
    %c0_i32_0 = arith.constant 0 : i32
    %c0_i32_1 = arith.constant 0 : i32
    %c0_i32_2 = arith.constant 0 : i32
    return %c0_i32, %c0_i32_0, %c0_i32_1 : i32, i32, i32
  }
  func.func @transform_9(%arg0: i32) -> (i32, i32, i32) {
    %c0_i32 = arith.constant 0 : i32
    %c0_i32_0 = arith.constant 0 : i32
    %c0_i32_1 = arith.constant 0 : i32
    %c0_i32_2 = arith.constant 0 : i32
    return %c0_i32, %c0_i32_0, %c0_i32_1 : i32, i32, i32
  }
  func.func @transform_10(%arg0: i32) -> (i32, i32) {
    %c0_i32 = arith.constant 0 : i32
    %c0_i32_0 = arith.constant 0 : i32
    %c0_i32_1 = arith.constant 0 : i32
    return %c0_i32, %c0_i32_0 : i32, i32
  }
  func.func @transform_11(%arg0: i32) -> (i32, i32, i32) {
    %c0_i32 = arith.constant 0 : i32
    %c0_i32_0 = arith.constant 0 : i32
    %c0_i32_1 = arith.constant 0 : i32
    return %arg0, %c0_i32, %c0_i32_0 : i32, i32, i32
  }
  func.func @transform_12(%arg0: i32) -> (i32, i32, i32) {
    %c0_i32 = arith.constant 0 : i32
    %c0_i32_0 = arith.constant 0 : i32
    %c0_i32_1 = arith.constant 0 : i32
    return %arg0, %c0_i32, %c0_i32_0 : i32, i32, i32
  }
  func.func @transform_13(%arg0: i32) -> (i32, i32, i32) {
    %c0_i32 = arith.constant 0 : i32
    %c0_i32_0 = arith.constant 0 : i32
    %c0_i32_1 = arith.constant 0 : i32
    return %arg0, %c0_i32, %c0_i32_0 : i32, i32, i32
  }
}

</mosaic_0001>

<llo_original>
// kernel: block_forward.1
$region0: #{block_forward.1}
  #allocation0 [shape = 'u32[]', space=smem, size = 0x4, offset = 0x4, fixed_abs, tag = 'smem constant byte address 0x4 - core index']
  #allocation1 [shape = 'u32[72,128]{1,0:T(1,128)}', space=vmem, size = 0x9000, scoped, tag = 'internal scratch']
  %s0 = inlined_call_operand.vmem [shape: f32[1,3,128], index: 0, kind: input, shape index: {}, may-alias: {0,11}]
  %s1 = inlined_call_operand.vmem [shape: f32[2,3,1], index: 1, kind: input, shape index: {}]
  %s2 = inlined_call_operand.vmem [shape: f32[2,3,1], index: 2, kind: input, shape index: {}]
  %s3 = inlined_call_operand.vmem [shape: f32[2,3,3], index: 3, kind: input, shape index: {}]
  %s4 = inlined_call_operand.vmem [shape: f32[2], index: 4, kind: input, shape index: {}]
  %s5 = inlined_call_operand.vmem [shape: f32[128,128], index: 5, kind: input, shape index: {}]
  %s6 = inlined_call_operand.vmem [shape: f32[2,32,1], index: 6, kind: input, shape index: {}]
  %s7 = inlined_call_operand.vmem [shape: f32[2,32,1], index: 7, kind: input, shape index: {}]
  %s8 = inlined_call_operand.vmem [shape: f32[2,4,32], index: 8, kind: input, shape index: {}]
  %s9 = inlined_call_operand.vmem [shape: f32[2,4,1], index: 9, kind: input, shape index: {}]
  %s10 = inlined_call_operand.vmem [shape: f32[128,2], index: 10, kind: input, shape index: {}]
  %s11 = inlined_call_operand.vmem [shape: f32[1,3,128], index: 11, kind: output, shape index: {0}, may-alias: {0,11}]
  %s12 = inlined_call_operand.hbm [shape: f32[1,1,2], index: 12, kind: output, shape index: {1}]
  %s13 = inlined_call_operand.hbm [shape: f32[1,1,2], index: 13, kind: output, shape index: {2}]
  %14 = xla_tuple %s11, %s12, %s13
  %s15 = sld [smem:[#allocation0]]
  $region74: #{block_forward.1} parent=0
    _
  %s17 = ssub.s32 1, %s15
  %s18 = scalar_select 0, %s17, %s15
  $region1: #{block_forward.1} parent=0
    #allocation2 [shape = 'u8[512]{0}', space=smem, size = 0x200, scoped, tag = 'input window, operand 4, single buffered']
    #allocation3 [shape = 's32[1]{0}', space=sflag, size = 0x4, scoped, tag = 'scoped memory for block_forward.1']
    #allocation4 [shape = 's32[1]{0}', space=sflag, size = 0x4, scoped, tag = 'scoped memory for block_forward.1']
    #allocation5 [shape = 'u8[512]{0}', space=vmem, size = 0x400, scoped, tag = 'output window, operand 1, single buffered']
    #allocation6 [shape = 'u8[512]{0}', space=vmem, size = 0x400, scoped, tag = 'output window, operand 2, single buffered']
    #allocation7 [shape = 's32[1]{0}', space=sflag, size = 0x4, scoped, tag = 'scoped memory for block_forward.1']
    %19 = vsyncpa [#allocation4], 0
    %20 = vsyncpa [#allocation3], 0
    %21 = vsyncpa [#allocation7], 0
    // Predicated region
    $region2: #{block_forward.1} parent=1 // pred_check
      _
    $region3: #{block_forward.1} parent=1 // pred_check_branch
      %23 = sbr.rel (0) target = $region5
    $region4: #{block_forward.1} parent=1 // pred_region
      _
    $region5: #{block_forward.1} parent=1 // pred_fallthru
      _
    // Predicated region
    $region6: #{block_forward.1} parent=1 // pred_check
      _
    $region7: #{block_forward.1} parent=1 // pred_check_branch
      %25 = sbr.rel (0) target = $region9
    $region8: #{block_forward.1} parent=1 // pred_region
      _
    $region9: #{block_forward.1} parent=1 // pred_fallthru
      _
    // Predicated region
    $region10: #{block_forward.1} parent=1 // pred_check
      _
    $region11: #{block_forward.1} parent=1 // pred_check_branch
      %27 = sbr.rel (0) target = $region13
    $region12: #{block_forward.1} parent=1 // pred_region
      _
    $region13: #{block_forward.1} parent=1 // pred_fallthru
      _
    // Predicated region
    $region14: #{block_forward.1} parent=1 // pred_check
      _
    $region15: #{block_forward.1} parent=1 // pred_check_branch
      %29 = sbr.rel (0) target = $region17
    $region16: #{block_forward.1} parent=1 // pred_region
      _
    $region17: #{block_forward.1} parent=1 // pred_fallthru
      _
    // Predicated region
    $region18: #{block_forward.1} parent=1 // pred_check
      _
    $region19: #{block_forward.1} parent=1 // pred_check_branch
      %31 = sbr.rel (0) target = $region21
    $region20: #{block_forward.1} parent=1 // pred_region
      %33 = vsyncadd [#allocation4], 0
      %s35 = sshll.u32 %s4, 4
      %s36 = int_to_ptr.vmem [resolvable:$true] %s35
      %38 = dma.vmem_to_smem %s36, 16, [#allocation2], [#allocation4]
    $region21: #{block_forward.1} parent=1 // pred_fallthru
      _
    // Predicated region
    $region22: #{block_forward.1} parent=1 // pred_check
      _
    $region23: #{block_forward.1} parent=1 // pred_check_branch
      %40 = sbr.rel (0) target = $region25
    $region24: #{block_forward.1} parent=1 // pred_region
      _
    $region25: #{block_forward.1} parent=1 // pred_fallthru
      _
    // Predicated region
    $region26: #{block_forward.1} parent=1 // pred_check
      _
    $region27: #{block_forward.1} parent=1 // pred_check_branch
      %42 = sbr.rel (0) target = $region29
    $region28: #{block_forward.1} parent=1 // pred_region
      _
    $region29: #{block_forward.1} parent=1 // pred_fallthru
      _
    // Predicated region
    $region30: #{block_forward.1} parent=1 // pred_check
      _
    $region31: #{block_forward.1} parent=1 // pred_check_branch
      %44 = sbr.rel (0) target = $region33
    $region32: #{block_forward.1} parent=1 // pred_region
      _
    $region33: #{block_forward.1} parent=1 // pred_fallthru
      _
    // Predicated region
    $region34: #{block_forward.1} parent=1 // pred_check
      _
    $region35: #{block_forward.1} parent=1 // pred_check_branch
      %46 = sbr.rel (0) target = $region37
    $region36: #{block_forward.1} parent=1 // pred_region
      _
    $region37: #{block_forward.1} parent=1 // pred_fallthru
      _
    // Predicated region
    $region38: #{block_forward.1} parent=1 // pred_check
      _
    $region39: #{block_forward.1} parent=1 // pred_check_branch
      %48 = sbr.rel (0) target = $region41
    $region40: #{block_forward.1} parent=1 // pred_region
      _
    $region41: #{block_forward.1} parent=1 // pred_fallthru
      _
    // Predicated region
    $region42: #{block_forward.1} parent=1 // pred_check
      _
    $region43: #{block_forward.1} parent=1 // pred_check_branch
      %50 = sbr.rel (0) target = $region45
    $region44: #{block_forward.1} parent=1 // pred_region
      _
    $region45: #{block_forward.1} parent=1 // pred_fallthru
      _
    // Predicated region
    $region46: #{block_forward.1} parent=1 // pred_check
      _
    $region47: #{block_forward.1} parent=1 // pred_check_branch
      %52 = sbr.rel (0) target = $region49
    $region48: #{block_forward.1} parent=1 // pred_region
      %54 = dma.done [#allocation4], 16
    $region49: #{block_forward.1} parent=1 // pred_fallthru
      _
    %55 = sfence
    %v56 = vld [vmem:[%s5] sm:$0xff]
    %v57 = vld [vmem:[%s5 + $0x8] sm:$0xff]
    %v58 = vld [vmem:[%s5 + $0x10] sm:$0xff]
    %v59 = vld [vmem:[%s5 + $0x18] sm:$0xff]
    %v60 = vld [vmem:[%s5 + $0x20] sm:$0xff]
    %v61 = vld [vmem:[%s5 + $0x28] sm:$0xff]
    %v62 = vld [vmem:[%s5 + $0x30] sm:$0xff]
    %v63 = vld [vmem:[%s5 + $0x38] sm:$0xff]
    %v64 = vld [vmem:[%s5 + $0x40] sm:$0xff]
    %v65 = vld [vmem:[%s5 + $0x48] sm:$0xff]
    %v66 = vld [vmem:[%s5 + $0x50] sm:$0xff]
    %v67 = vld [vmem:[%s5 + $0x58] sm:$0xff]
    %v68 = vld [vmem:[%s5 + $0x60] sm:$0xff]
    %v69 = vld [vmem:[%s5 + $0x68] sm:$0xff]
    %v70 = vld [vmem:[%s5 + $0x70] sm:$0xff]
    %v71 = vld [vmem:[%s5 + $0x78] sm:$0xff]
    %v72 = vld [vmem:[%s0] sm:$0x7]
    %v73 = vld [vmem:[%s1] sm:$0x7]
    %75 = vset.pattern.permute.xlu0 0
    %76 = vperm.xlu0 %75, %v73
    %v77 = vpop.permute.xlu0 %76
    %v79 = vadd.f32 %v72, %v77
    %v80 = vld [vmem:[%s2] sm:$0x7]
    %v81 = vmul.f32 %v80, 1.442695
    %v82 = vpow.pop %v81
    %84 = vset.pattern.permute.xlu0 0
    %85 = vperm.xlu0 %84, %v82
    %v86 = vpop.permute.xlu0 %85
    %v88 = vmul.f32 %v79, %v86
    %v89 = vld [vmem:[%s3] sm:$0x7]
    %vm90 = vcmask 23552
    %v92 = vsel %vm90, %v89, 0
    %vm94 = vcmask 1042432
    %v96 = vsel %vm94, %v88, 0
    %98 = vmatpush.msra.mxu0 0.0
    %99 = vmatpush.msra.mxu0 0.0
    %100 = vmatpush.msra.mxu0 0.0
    %101 = vmatpush.msra.mxu0 0.0
    %102 = vmatpush.msra.mxu0 0.0
    %103 = vmatpush.msra.mxu0 0.0
    %104 = vmatpush.msra.mxu0 0.0
    %105 = vmatpush.msra.mxu0 0.0
    %106 = vmatpush.msra.mxu0 0.0
    %107 = vmatpush.msra.mxu0 0.0
    %108 = vmatpush.msra.mxu0 0.0
    %109 = vmatpush.msra.mxu0 0.0
    %110 = vmatpush.msra.mxu0 0.0
    %111 = vmatpush.msra.mxu0 0.0
    %112 = vmatpush.msra.mxu0 0.0
    %113 = vmatpush.msra.mxu0 %v96
    %114 = vmatmul.f32.gmra.mxu0 %v92
    %v115 = vpop.f32.mrf.mxu0
    %v116 = vadd.f32 0.0, %v115
    %117 = vdwg.mxu0
    %118 = vmatpush.msra.mxu0 %v71
    %119 = vmatpush.msra.mxu0 %v70
    %120 = vmatpush.msra.mxu0 %v69
    %121 = vmatpush.msra.mxu0 %v68
    %122 = vmatpush.msra.mxu0 %v67
    %123 = vmatpush.msra.mxu0 %v66
    %124 = vmatpush.msra.mxu0 %v65
    %125 = vmatpush.msra.mxu0 %v64
    %126 = vmatpush.msra.mxu0 %v63
    %127 = vmatpush.msra.mxu0 %v62
    %128 = vmatpush.msra.mxu0 %v61
    %129 = vmatpush.msra.mxu0 %v60
    %130 = vmatpush.msra.mxu0 %v59
    %131 = vmatpush.msra.mxu0 %v58
    %132 = vmatpush.msra.mxu0 %v57
    %133 = vmatpush.msra.mxu0 %v56
    %134 = vmatmul.f32.gmra.mxu0 %v116
    %v135 = vpop.f32.mrf.mxu0
    %v136 = vadd.f32 0.0, %v135
    %137 = vdwg.mxu0
    %v138 = vld [vmem:[%s6] sm:$0xff]
    %v139 = vld [vmem:[%s6 + $0x8] sm:$0xff]
    %v140 = vld [vmem:[%s6 + $0x10] sm:$0xff]
    %v141 = vld [vmem:[%s6 + $0x18] sm:$0xff]
    %v142 = vld [vmem:[%s7] sm:$0xff]
    %v143 = vld [vmem:[%s7 + $0x8] sm:$0xff]
    %v144 = vld [vmem:[%s7 + $0x10] sm:$0xff]
    %v145 = vld [vmem:[%s7 + $0x18] sm:$0xff]
    %147 = vset.pattern.permute.xlu0 0
    %148 = vperm.xlu0 %147, %v142
    %v149 = vpop.permute.xlu0 %148
    %152 = vset.pattern.permute.xlu0 0
    %153 = vperm.xlu0 %152, %v143
    %v154 = vpop.permute.xlu0 %153
    %157 = vset.pattern.permute.xlu0 0
    %158 = vperm.xlu0 %157, %v144
    %v159 = vpop.permute.xlu0 %158
    %162 = vset.pattern.permute.xlu0 0
    %163 = vperm.xlu0 %162, %v145
    %v164 = vpop.permute.xlu0 %163
    %vm166 = vcmask 7168
    %v168 = vsel %vm166, %v138, 0
    %v171 = vsel %vm166, %v139, 0
    %v174 = vsel %vm166, %v140, 0
    %v177 = vsel %vm166, %v141, 0
    %vm179 = vcmask 1040384
    %v181 = vsel %vm179, %v136, 0
    %183 = vmatpush.msra.mxu0 0.0
    %184 = vmatpush.msra.mxu0 0.0
    %185 = vmatpush.msra.mxu0 0.0
    %186 = vmatpush.msra.mxu0 0.0
    %187 = vmatpush.msra.mxu0 0.0
    %188 = vmatpush.msra.mxu0 0.0
    %189 = vmatpush.msra.mxu0 0.0
    %190 = vmatpush.msra.mxu0 0.0
    %191 = vmatpush.msra.mxu0 0.0
    %192 = vmatpush.msra.mxu0 0.0
    %193 = vmatpush.msra.mxu0 0.0
    %194 = vmatpush.msra.mxu0 0.0
    %195 = vmatpush.msra.mxu0 0.0
    %196 = vmatpush.msra.mxu0 0.0
    %197 = vmatpush.msra.mxu0 0.0
    %198 = vmatpush.msra.mxu0 %v181
    %199 = vmatmul.f32.gmra.mxu0 %v168
    %v200 = vpop.f32.mrf.mxu0
    %v201 = vadd.f32 %v149, %v200
    %202 = vmatmul.f32.gmra.mxu0 %v171
    %v203 = vpop.f32.mrf.mxu0
    %v204 = vadd.f32 %v154, %v203
    %205 = vmatmul.f32.gmra.mxu0 %v174
    %v206 = vpop.f32.mrf.mxu0
    %v207 = vadd.f32 %v159, %v206
    %208 = vmatmul.f32.gmra.mxu0 %v177
    %v209 = vpop.f32.mrf.mxu0
    %v210 = vadd.f32 %v164, %v209
    %211 = vdwg.mxu0
    %v212 = vmax.f32 %v201, 0.0
    %v213 = vmax.f32 %v204, 0.0
    %v214 = vmax.f32 %v207, 0.0
    %v215 = vmax.f32 %v210, 0.0
    %216 = vmatpush.msra.mxu0 %v71
    %217 = vmatpush.msra.mxu0 %v70
    %218 = vmatpush.msra.mxu0 %v69
    %219 = vmatpush.msra.mxu0 %v68
    %220 = vmatpush.msra.mxu0 %v67
    %221 = vmatpush.msra.mxu0 %v66
    %222 = vmatpush.msra.mxu0 %v65
    %223 = vmatpush.msra.mxu0 %v64
    %224 = vmatpush.msra.mxu0 %v63
    %225 = vmatpush.msra.mxu0 %v62
    %226 = vmatpush.msra.mxu0 %v61
    %227 = vmatpush.msra.mxu0 %v60
    %228 = vmatpush.msra.mxu0 %v59
    %229 = vmatpush.msra.mxu0 %v58
    %230 = vmatpush.msra.mxu0 %v57
    %231 = vmatpush.msra.mxu0 %v56
    %232 = vmatmul.f32.gmra.mxu0 %v212
    %v233 = vpop.f32.mrf.mxu0
    %v234 = vadd.f32 0.0, %v233
    %235 = vmatmul.f32.gmra.mxu0 %v213
    %v236 = vpop.f32.mrf.mxu0
    %v237 = vadd.f32 0.0, %v236
    %238 = vmatmul.f32.gmra.mxu0 %v214
    %v239 = vpop.f32.mrf.mxu0
    %v240 = vadd.f32 0.0, %v239
    %241 = vmatmul.f32.gmra.mxu0 %v215
    %v242 = vpop.f32.mrf.mxu0
    %v243 = vadd.f32 0.0, %v242
    %244 = vdwg.mxu0
    %v245 = vld [vmem:[%s8] sm:$0xf]
    %v246 = vld [vmem:[%s9] sm:$0xf]
    %248 = vset.pattern.permute.xlu0 0
    %249 = vperm.xlu0 %248, %v246
    %v250 = vpop.permute.xlu0 %249
    %vm252 = vcmask 261120
    %v254 = vsel %vm252, %v245, 0
    %256 = vmatpush.msra.mxu0 0.0
    %257 = vmatpush.msra.mxu0 0.0
    %258 = vmatpush.msra.mxu0 0.0
    %259 = vmatpush.msra.mxu0 0.0
    %260 = vmatpush.msra.mxu0 0.0
    %261 = vmatpush.msra.mxu0 0.0
    %262 = vmatpush.msra.mxu0 0.0
    %263 = vmatpush.msra.mxu0 0.0
    %264 = vmatpush.msra.mxu0 0.0
    %265 = vmatpush.msra.mxu0 0.0
    %266 = vmatpush.msra.mxu0 0.0
    %267 = vmatpush.msra.mxu0 0.0
    %268 = vmatpush.msra.mxu0 %v243
    %269 = vmatpush.msra.mxu0 %v240
    %270 = vmatpush.msra.mxu0 %v237
    %271 = vmatpush.msra.mxu0 %v234
    %272 = vmatmul.f32.gmra.mxu0 %v254
    %v273 = vpop.f32.mrf.mxu0
    %v274 = vadd.f32 %v250, %v273
    %275 = vdwg.mxu0
    %v276 = vadd.f32 %v274, 2.0
    %v277 = vsub.f32 0.0, %v276
    %v278 = vmax.f32 %v277, 0.0
    %v279 = vsub.f32 %v277, %v278
    %v280 = vmul.f32 %v279, 1.442695
    %v281 = vpow.pop %v280
    %v282 = vsub.f32 0.0, %v278
    %v283 = vmul.f32 %v282, 1.442695
    %v284 = vpow.pop %v283
    %v285 = vadd.f32 %v281, %v284
    %v286 = vlog2.pop %v285
    %v287 = vmul.f32 %v286, 0.6931472
    %v288 = vadd.f32 %v278, %v287
    %v289 = vsub.f32 0.0, %v288
    %v290 = vmul.f32 %v289, 1.442695
    %v291 = vpow.pop %v290
    %v293 = vrot.slane %v274, 7
    %v295 = vadd.f32 %v116, %v293
    %v297 = vrot.slane %v291, 1
    %v299 = vmul.f32 %v295, %v297
    %v300 = vsel %vm179, %v116, %v299
    %v302 = vrot.slane %v289, 2
    %vm304 = vcmask 1041408
    %v305 = vsel %vm304, %v302, 0.0
    %v306 = vrot.slane %v305, 4
    %v307 = vadd.f32 %v305, %v306
    %v308 = vrot.slane %v307, 2
    %v309 = vadd.f32 %v307, %v308
    %v310 = vrot.slane %v309, 1
    %v311 = vadd.f32 %v309, %v310
    %v312 = vadd.f32 %v311, 0.0
    %s313 = sld [smem:[#allocation2]]
    %v314 = vstv %s313
    %v315 = vadd.f32 %v314, 0.0
    %s316 = scalar_lea.vmem %s1, 4
    %v317 = vld [vmem:[%s316] sm:$0x7]
    %319 = vset.pattern.permute.xlu0 0
    %320 = vperm.xlu0 %319, %v317
    %v321 = vpop.permute.xlu0 %320
    %v323 = vadd.f32 %v300, %v321
    %s324 = scalar_lea.vmem %s2, 4
    %v325 = vld [vmem:[%s324] sm:$0x7]
    %v326 = vmul.f32 %v325, 1.442695
    %v327 = vpow.pop %v326
    %329 = vset.pattern.permute.xlu0 0
    %330 = vperm.xlu0 %329, %v327
    %v331 = vpop.permute.xlu0 %330
    %v333 = vmul.f32 %v323, %v331
    %s334 = scalar_lea.vmem %s3, 4
    %v335 = vld [vmem:[%s334] sm:$0x7]
    %v337 = vsel %vm90, %v335, 0
    %v340 = vsel %vm94, %v333, 0
    %342 = vmatpush.msra.mxu0 0.0
    %343 = vmatpush.msra.mxu0 0.0
    %344 = vmatpush.msra.mxu0 0.0
    %345 = vmatpush.msra.mxu0 0.0
    %346 = vmatpush.msra.mxu0 0.0
    %347 = vmatpush.msra.mxu0 0.0
    %348 = vmatpush.msra.mxu0 0.0
    %349 = vmatpush.msra.mxu0 0.0
    %350 = vmatpush.msra.mxu0 0.0
    %351 = vmatpush.msra.mxu0 0.0
    %352 = vmatpush.msra.mxu0 0.0
    %353 = vmatpush.msra.mxu0 0.0
    %354 = vmatpush.msra.mxu0 0.0
    %355 = vmatpush.msra.mxu0 0.0
    %356 = vmatpush.msra.mxu0 0.0
    %357 = vmatpush.msra.mxu0 %v340
    %358 = vmatmul.f32.gmra.mxu0 %v337
    %v359 = vpop.f32.mrf.mxu0
    %v360 = vadd.f32 0.0, %v359
    %361 = vdwg.mxu0
    %362 = vmatpush.msra.mxu0 %v71
    %363 = vmatpush.msra.mxu0 %v70
    %364 = vmatpush.msra.mxu0 %v69
    %365 = vmatpush.msra.mxu0 %v68
    %366 = vmatpush.msra.mxu0 %v67
    %367 = vmatpush.msra.mxu0 %v66
    %368 = vmatpush.msra.mxu0 %v65
    %369 = vmatpush.msra.mxu0 %v64
    %370 = vmatpush.msra.mxu0 %v63
    %371 = vmatpush.msra.mxu0 %v62
    %372 = vmatpush.msra.mxu0 %v61
    %373 = vmatpush.msra.mxu0 %v60
    %374 = vmatpush.msra.mxu0 %v59
    %375 = vmatpush.msra.mxu0 %v58
    %376 = vmatpush.msra.mxu0 %v57
    %377 = vmatpush.msra.mxu0 %v56
    %378 = vmatmul.f32.gmra.mxu0 %v360
    %v379 = vpop.f32.mrf.mxu0
    %v380 = vadd.f32 0.0, %v379
    %381 = vdwg.mxu0
    %s382 = scalar_lea.vmem %s6, 32
    %v383 = vld [vmem:[%s382] sm:$0xff]
    %v384 = vld [vmem:[%s382 + $0x8] sm:$0xff]
    %v385 = vld [vmem:[%s382 + $0x10] sm:$0xff]
    %v386 = vld [vmem:[%s382 + $0x18] sm:$0xff]
    %s387 = scalar_lea.vmem %s7, 32
    %v388 = vld [vmem:[%s387] sm:$0xff]
    %v389 = vld [vmem:[%s387 + $0x8] sm:$0xff]
    %v390 = vld [vmem:[%s387 + $0x10] sm:$0xff]
    %v391 = vld [vmem:[%s387 + $0x18] sm:$0xff]
    %393 = vset.pattern.permute.xlu0 0
    %394 = vperm.xlu0 %393, %v388
    %v395 = vpop.permute.xlu0 %394
    %398 = vset.pattern.permute.xlu0 0
    %399 = vperm.xlu0 %398, %v389
    %v400 = vpop.permute.xlu0 %399
    %403 = vset.pattern.permute.xlu0 0
    %404 = vperm.xlu0 %403, %v390
    %v405 = vpop.permute.xlu0 %404
    %408 = vset.pattern.permute.xlu0 0
    %409 = vperm.xlu0 %408, %v391
    %v410 = vpop.permute.xlu0 %409
    %v413 = vsel %vm166, %v383, 0
    %v416 = vsel %vm166, %v384, 0
    %v419 = vsel %vm166, %v385, 0
    %v422 = vsel %vm166, %v386, 0
    %v425 = vsel %vm179, %v380, 0
    %427 = vmatpush.msra.mxu0 0.0
    %428 = vmatpush.msra.mxu0 0.0
    %429 = vmatpush.msra.mxu0 0.0
    %430 = vmatpush.msra.mxu0 0.0
    %431 = vmatpush.msra.mxu0 0.0
    %432 = vmatpush.msra.mxu0 0.0
    %433 = vmatpush.msra.mxu0 0.0
    %434 = vmatpush.msra.mxu0 0.0
    %435 = vmatpush.msra.mxu0 0.0
    %436 = vmatpush.msra.mxu0 0.0
    %437 = vmatpush.msra.mxu0 0.0
    %438 = vmatpush.msra.mxu0 0.0
    %439 = vmatpush.msra.mxu0 0.0
    %440 = vmatpush.msra.mxu0 0.0
    %441 = vmatpush.msra.mxu0 0.0
    %442 = vmatpush.msra.mxu0 %v425
    %443 = vmatmul.f32.gmra.mxu0 %v413
    %v444 = vpop.f32.mrf.mxu0
    %v445 = vadd.f32 %v395, %v444
    %446 = vmatmul.f32.gmra.mxu0 %v416
    %v447 = vpop.f32.mrf.mxu0
    %v448 = vadd.f32 %v400, %v447
    %449 = vmatmul.f32.gmra.mxu0 %v419
    %v450 = vpop.f32.mrf.mxu0
    %v451 = vadd.f32 %v405, %v450
    %452 = vmatmul.f32.gmra.mxu0 %v422
    %v453 = vpop.f32.mrf.mxu0
    %v454 = vadd.f32 %v410, %v453
    %455 = vdwg.mxu0
    %v456 = vmax.f32 %v445, 0.0
    %v457 = vmax.f32 %v448, 0.0
    %v458 = vmax.f32 %v451, 0.0
    %v459 = vmax.f32 %v454, 0.0
    %460 = vmatpush.msra.mxu0 %v71
    %461 = vmatpush.msra.mxu0 %v70
    %462 = vmatpush.msra.mxu0 %v69
    %463 = vmatpush.msra.mxu0 %v68
    %464 = vmatpush.msra.mxu0 %v67
    %465 = vmatpush.msra.mxu0 %v66
    %466 = vmatpush.msra.mxu0 %v65
    %467 = vmatpush.msra.mxu0 %v64
    %468 = vmatpush.msra.mxu0 %v63
    %469 = vmatpush.msra.mxu0 %v62
    %470 = vmatpush.msra.mxu0 %v61
    %471 = vmatpush.msra.mxu0 %v60
    %472 = vmatpush.msra.mxu0 %v59
    %473 = vmatpush.msra.mxu0 %v58
    %474 = vmatpush.msra.mxu0 %v57
    %475 = vmatpush.msra.mxu0 %v56
    %476 = vmatmul.f32.gmra.mxu0 %v456
    %v477 = vpop.f32.mrf.mxu0
    %v478 = vadd.f32 0.0, %v477
    %479 = vmatmul.f32.gmra.mxu0 %v457
    %v480 = vpop.f32.mrf.mxu0
    %v481 = vadd.f32 0.0, %v480
    %482 = vmatmul.f32.gmra.mxu0 %v458
    %v483 = vpop.f32.mrf.mxu0
    %v484 = vadd.f32 0.0, %v483
    %485 = vmatmul.f32.gmra.mxu0 %v459
    %v486 = vpop.f32.mrf.mxu0
    %v487 = vadd.f32 0.0, %v486
    %488 = vdwg.mxu0
    %s489 = scalar_lea.vmem %s8, 4
    %v490 = vld [vmem:[%s489] sm:$0xf]
    %s491 = scalar_lea.vmem %s9, 4
    %v492 = vld [vmem:[%s491] sm:$0xf]
    %494 = vset.pattern.permute.xlu0 0
    %495 = vperm.xlu0 %494, %v492
    %v496 = vpop.permute.xlu0 %495
    %v499 = vsel %vm252, %v490, 0
    %501 = vmatpush.msra.mxu0 0.0
    %502 = vmatpush.msra.mxu0 0.0
    %503 = vmatpush.msra.mxu0 0.0
    %504 = vmatpush.msra.mxu0 0.0
    %505 = vmatpush.msra.mxu0 0.0
    %506 = vmatpush.msra.mxu0 0.0
    %507 = vmatpush.msra.mxu0 0.0
    %508 = vmatpush.msra.mxu0 0.0
    %509 = vmatpush.msra.mxu0 0.0
    %510 = vmatpush.msra.mxu0 0.0
    %511 = vmatpush.msra.mxu0 0.0
    %512 = vmatpush.msra.mxu0 0.0
    %513 = vmatpush.msra.mxu0 %v487
    %514 = vmatpush.msra.mxu0 %v484
    %515 = vmatpush.msra.mxu0 %v481
    %516 = vmatpush.msra.mxu0 %v478
    %517 = vmatmul.f32.gmra.mxu0 %v499
    %v518 = vpop.f32.mrf.mxu0
    %v519 = vadd.f32 %v496, %v518
    %520 = vdwg.mxu0
    %v521 = vadd.f32 %v519, 2.0
    %v522 = vsub.f32 0.0, %v521
    %v523 = vmax.f32 %v522, 0.0
    %v524 = vsub.f32 %v522, %v523
    %v525 = vmul.f32 %v524, 1.442695
    %v526 = vpow.pop %v525
    %v527 = vsub.f32 0.0, %v523
    %v528 = vmul.f32 %v527, 1.442695
    %v529 = vpow.pop %v528
    %v530 = vadd.f32 %v526, %v529
    %v531 = vlog2.pop %v530
    %v532 = vmul.f32 %v531, 0.6931472
    %v533 = vadd.f32 %v523, %v532
    %v534 = vsub.f32 0.0, %v533
    %v535 = vmul.f32 %v534, 1.442695
    %v536 = vpow.pop %v535
    %v538 = vrot.slane %v519, 7
    %v540 = vadd.f32 %v360, %v538
    %v542 = vrot.slane %v536, 1
    %v544 = vmul.f32 %v540, %v542
    %v545 = vsel %vm179, %v360, %v544
    %v547 = vrot.slane %v534, 2
    %v549 = vsel %vm304, %v547, 0.0
    %v550 = vrot.slane %v549, 4
    %v551 = vadd.f32 %v549, %v550
    %v552 = vrot.slane %v551, 2
    %v553 = vadd.f32 %v551, %v552
    %v554 = vrot.slane %v553, 1
    %v555 = vadd.f32 %v553, %v554
    %v556 = vadd.f32 %v312, %v555
    %s557 = sld [smem:[#allocation2 + $0x1]]
    %v558 = vstv %s557
    %v559 = vadd.f32 %v315, %v558
    %560 = vst [vmem:[%s11] sm:$0x7] %v545
    %v561 = vld [vmem:[%s10] sm:$0xff]
    %v562 = vld [vmem:[%s10 + $0x8] sm:$0xff]
    %v563 = vld [vmem:[%s10 + $0x10] sm:$0xff]
    %v564 = vld [vmem:[%s10 + $0x18] sm:$0xff]
    %v565 = vld [vmem:[%s10 + $0x20] sm:$0xff]
    %v566 = vld [vmem:[%s10 + $0x28] sm:$0xff]
    %v567 = vld [vmem:[%s10 + $0x30] sm:$0xff]
    %v568 = vld [vmem:[%s10 + $0x38] sm:$0xff]
    %v569 = vld [vmem:[%s10 + $0x40] sm:$0xff]
    %v570 = vld [vmem:[%s10 + $0x48] sm:$0xff]
    %v571 = vld [vmem:[%s10 + $0x50] sm:$0xff]
    %v572 = vld [vmem:[%s10 + $0x58] sm:$0xff]
    %v573 = vld [vmem:[%s10 + $0x60] sm:$0xff]
    %v574 = vld [vmem:[%s10 + $0x68] sm:$0xff]
    %v575 = vld [vmem:[%s10 + $0x70] sm:$0xff]
    %v576 = vld [vmem:[%s10 + $0x78] sm:$0xff]
    %577 = vmatpush.msra.mxu0 %v576
    %578 = vmatpush.msra.mxu0 %v575
    %579 = vmatpush.msra.mxu0 %v574
    %580 = vmatpush.msra.mxu0 %v573
    %581 = vmatpush.msra.mxu0 %v572
    %582 = vmatpush.msra.mxu0 %v571
    %583 = vmatpush.msra.mxu0 %v570
    %584 = vmatpush.msra.mxu0 %v569
    %585 = vmatpush.msra.mxu0 %v568
    %586 = vmatpush.msra.mxu0 %v567
    %587 = vmatpush.msra.mxu0 %v566
    %588 = vmatpush.msra.mxu0 %v565
    %589 = vmatpush.msra.mxu0 %v564
    %590 = vmatpush.msra.mxu0 %v563
    %591 = vmatpush.msra.mxu0 %v562
    %592 = vmatpush.msra.mxu0 %v561
    %593 = vmatmul.f32.gmra.mxu0 %v556
    %v594 = vpop.f32.mrf.mxu0
    %v595 = vadd.f32 %v559, %v594
    %596 = vdwg.mxu0
    %vm597 = vcmask 8192
    %598 = vst.msk [vmem:[#allocation5] sm:$0x1] %vm597, %v595
    %v599 = vmul.f32 %v545, %v545
    %v600 = vadd.f32 %v599, 1.837877
    %v601 = vmul.f32 %v600, -0.5
    %v602 = vsel %vm94, %v601, 0.0
    %v603 = vrot.slane %v602, 4
    %v604 = vadd.f32 %v602, %v603
    %v605 = vrot.slane %v604, 2
    %v606 = vadd.f32 %v604, %v605
    %v607 = vrot.slane %v606, 1
    %v608 = vadd.f32 %v606, %v607
    %609 = vmatpush.msra.mxu0 %v576
    %610 = vmatpush.msra.mxu0 %v575
    %611 = vmatpush.msra.mxu0 %v574
    %612 = vmatpush.msra.mxu0 %v573
    %613 = vmatpush.msra.mxu0 %v572
    %614 = vmatpush.msra.mxu0 %v571
    %615 = vmatpush.msra.mxu0 %v570
    %616 = vmatpush.msra.mxu0 %v569
    %617 = vmatpush.msra.mxu0 %v568
    %618 = vmatpush.msra.mxu0 %v567
    %619 = vmatpush.msra.mxu0 %v566
    %620 = vmatpush.msra.mxu0 %v565
    %621 = vmatpush.msra.mxu0 %v564
    %622 = vmatpush.msra.mxu0 %v563
    %623 = vmatpush.msra.mxu0 %v562
    %624 = vmatpush.msra.mxu0 %v561
    %625 = vmatmul.f32.gmra.mxu0 %v608
    %v626 = vpop.f32.mrf.mxu0
    %v627 = vadd.f32 0.0, %v626
    %628 = vdwg.mxu0
    %629 = vst.msk [vmem:[#allocation6] sm:$0x1] %vm597, %v627
    // Predicated region
    $region50: #{block_forward.1} parent=1 // pred_check
      _
    $region51: #{block_forward.1} parent=1 // pred_check_branch
      %631 = sbr.rel (0) target = $region53
    $region52: #{block_forward.1} parent=1 // pred_region
      _
    $region53: #{block_forward.1} parent=1 // pred_fallthru
      _
    // Predicated region
    $region54: #{block_forward.1} parent=1 // pred_check
      _
    $region55: #{block_forward.1} parent=1 // pred_check_branch
      %633 = sbr.rel (0) target = $region57
    $region56: #{block_forward.1} parent=1 // pred_region
      %635 = vsyncadd [#allocation3], 0
      %s637 = sshll.u32 [#allocation5], 4
      %s638 = int_to_ptr.vmem [resolvable:$true] %s637
      %s639 = sshll.u32 %s12, 4
      %s640 = int_to_ptr.hbm [resolvable:$true] %s639
      %642 = dma.vmem_to_hbm [thread:$0]  %s638, 16, %s640, [#allocation3]
    $region57: #{block_forward.1} parent=1 // pred_fallthru
      _
    // Predicated region
    $region58: #{block_forward.1} parent=1 // pred_check
      _
    $region59: #{block_forward.1} parent=1 // pred_check_branch
      %644 = sbr.rel (0) target = $region61
    $region60: #{block_forward.1} parent=1 // pred_region
      %646 = vsyncadd [#allocation7], 0
      %s648 = sshll.u32 [#allocation6], 4
      %s649 = int_to_ptr.vmem [resolvable:$true] %s648
      %s650 = sshll.u32 %s13, 4
      %s651 = int_to_ptr.hbm [resolvable:$true] %s650
      %653 = dma.vmem_to_hbm [thread:$0]  %s649, 16, %s651, [#allocation7]
    $region61: #{block_forward.1} parent=1 // pred_fallthru
      _
    // Predicated region
    $region62: #{block_forward.1} parent=1 // pred_check
      _
    $region63: #{block_forward.1} parent=1 // pred_check_branch
      %655 = sbr.rel (0) target = $region65
    $region64: #{block_forward.1} parent=1 // pred_region
      _
    $region65: #{block_forward.1} parent=1 // pred_fallthru
      _
    // Predicated region
    $region66: #{block_forward.1} parent=1 // pred_check
      _
    $region67: #{block_forward.1} parent=1 // pred_check_branch
      %657 = sbr.rel (0) target = $region69
    $region68: #{block_forward.1} parent=1 // pred_region
      %659 = dma.done [#allocation3], 16
    $region69: #{block_forward.1} parent=1 // pred_fallthru
      _
    // Predicated region
    $region70: #{block_forward.1} parent=1 // pred_check
      _
    $region71: #{block_forward.1} parent=1 // pred_check_branch
      %661 = sbr.rel (0) target = $region73
    $region72: #{block_forward.1} parent=1 // pred_region
      %663 = dma.done [#allocation7], 16
    $region73: #{block_forward.1} parent=1 // pred_fallthru
      _
    %664 = vsyncpa [#allocation3], 1
    %665 = vsyncpa [#allocation7], 1
    %666 = vsyncpa [#allocation4], 1

</llo_original>
